<compile_context>
chip_gen: v6e
topology: v6e:2x2x1
jax: 0.10.0
libtpu: 0.0.40
codegen_flags: <defaults>
</compile_context>

<pallas_src>
import functools
import math

import jax
import jax.numpy as jnp
from jax.experimental import pallas as pl
from jax.experimental.pallas import tpu as pltpu

_LANE = 128
_INV_SQRT2 = 1.0 / math.sqrt(2.0)


def _round_up(x: int, m: int) -> int:
    return ((x + m - 1) // m) * m


def _vmem_capacity_bytes() -> int:
    try:
        return int(pltpu.get_tpu_info().vmem_capacity_bytes)
    except Exception:
        return 64 * 1024 * 1024  # conservative (v7x per-TC size)


def _gelu_f32(h):
    # Exact (erf-based) GELU in f32, matching torch.nn.GELU() default.
    return 0.5 * h * (1.0 + jax.lax.erf(h * jnp.float32(_INV_SQRT2)))


# ----------------------------------------------------------------------------
# Kernels
# ----------------------------------------------------------------------------
def _mlp_kernel_fused(x_ref, w1_ref, b1_ref, w2_ref, b2_ref, o_ref):
    # Weights fully VMEM-resident (constant index_map); grid only over rows.
    x = x_ref[...].astype(jnp.bfloat16)
    h = jnp.dot(x, w1_ref[...], preferred_element_type=jnp.float32)
    h = _gelu_f32(h + b1_ref[...])
    out = jnp.dot(h.astype(jnp.bfloat16), w2_ref[...],
                  preferred_element_type=jnp.float32)
    o_ref[...] = (out + b2_ref[...]).astype(o_ref.dtype)


def _mlp_kernel_stream_f32out(x_ref, w1_ref, b1_ref, w2_ref, b2_ref, o_ref):
    # H streamed on grid axis 1; accumulate directly into the (resident) f32
    # output block -> no scratch accumulator.
    hk = pl.program_id(1)

    @pl.when(hk == 0)
    def _init():
        o_ref[...] = jnp.zeros_like(o_ref)

    x = x_ref[...].astype(jnp.bfloat16)
    h = jnp.dot(x, w1_ref[...], preferred_element_type=jnp.float32)
    h = _gelu_f32(h + b1_ref[...])
    o_ref[...] += jnp.dot(h.astype(jnp.bfloat16), w2_ref[...],
                          preferred_element_type=jnp.float32)

    @pl.when(hk == pl.num_programs(1) - 1)
    def _finalize():
        o_ref[...] += b2_ref[...]


def _mlp_kernel_stream_acc(x_ref, w1_ref, b1_ref, w2_ref, b2_ref, o_ref, acc_ref):
    # Same as above but with an explicit f32 accumulator for non-f32 outputs.
    hk = pl.program_id(1)

    @pl.when(hk == 0)
    def _init():
        acc_ref[...] = jnp.zeros_like(acc_ref)

    x = x_ref[...].astype(jnp.bfloat16)
    h = jnp.dot(x, w1_ref[...], preferred_element_type=jnp.float32)
    h = _gelu_f32(h + b1_ref[...])
    acc_ref[...] += jnp.dot(h.astype(jnp.bfloat16), w2_ref[...],
                            preferred_element_type=jnp.float32)

    @pl.when(hk == pl.num_programs(1) - 1)
    def _finalize():
        o_ref[...] = (acc_ref[...] + b2_ref[...]).astype(o_ref.dtype)


# ----------------------------------------------------------------------------
# Planning (generation-aware tile sizes / path selection)
# ----------------------------------------------------------------------------
@functools.lru_cache(maxsize=None)
def _choose_plan(T, E_pad, H_pad, x_itemsize, out_itemsize):
    cap = _vmem_capacity_bytes()
    vmem_limit = int(cap * 0.8)
    weight_bytes = 2 * E_pad * H_pad * 2  # w1 + w2 in bf16
    T128 = _round_up(max(T, 1), _LANE)

    fused = weight_bytes <= cap // 3
    tm = th = 128

    if fused:
        # Per-token-row VMEM bytes: x + out (double-buffered) + h (f32 + bf16)
        # temporaries + f32 matmul result temp.
        per_row = (2 * E_pad * x_itemsize + 2 * E_pad * out_itemsize
                   + H_pad * 6 + E_pad * 4)
        fixed = 2 * weight_bytes + 2 * (H_pad + E_pad) * 4  # weights + biases
        if fixed + _LANE * per_row > vmem_limit:
            fused = False
        else:
            avail = vmem_limit - fixed
            tm = max(_LANE, min(1024, (avail // per_row) // _LANE * _LANE))
            tm = min(tm, T128)
            # Keep >= 2 row tiles when possible (megacore on v7x).
            if T128 >= 2 * _LANE and T128 // tm < 2:
                tm = max(_LANE, (T128 // 2) // _LANE * _LANE)
            th = H_pad

    if not fused:
        big_vmem = cap >= 96 * (1 << 20)          # v5e / v6e (128 MiB)
        th_target = 1024 if big_vmem else 512
        tm_target = 1024 if big_vmem else 640     # v7x: budgeted under 64 MiB
        # Largest 128-multiple <= th_target that divides H_pad.
        th = _LANE
        t = (min(th_target, H_pad) // _LANE) * _LANE
        while t >= _LANE:
            if H_pad % t == 0:
                th = t
                break
            t -= _LANE
        tm = max(_LANE, (min(tm_target, T128) // _LANE) * _LANE)

        def live(tm_, th_):
            return (2 * tm_ * E_pad * x_itemsize      # x (double-buffered)
                    + 2 * E_pad * th_ * 2             # w1 chunk (bf16)
                    + 2 * th_ * E_pad * 2             # w2 chunk (bf16)
                    + 2 * tm_ * E_pad * out_itemsize  # output / accumulator
                    + tm_ * E_pad * 4                 # f32 acc / dot temp
                    + tm_ * th_ * 6                   # h f32 + bf16 temps
                    + 2 * (th_ + E_pad) * 4)          # biases

        while live(tm, th) > vmem_limit and (tm > _LANE or th > _LANE):
            if th > _LANE and th >= tm:
                t = th - _LANE
                while t > _LANE and H_pad % t != 0:
                    t -= _LANE
                th = t
            elif tm > _LANE:
                tm -= _LANE
            else:
                break

    return fused, int(tm), int(th), int(vmem_limit)


# ----------------------------------------------------------------------------
# Host-side wrappers
# ----------------------------------------------------------------------------
def prepare_mlp_params(w1, b1, w2, b2, compute_dtype=jnp.bfloat16):
    """Pad (to 128-aligned) and cast weights ONCE; biases kept in f32."""
    E, H = w1.shape
    E_pad = _round_up(E, _LANE)
    H_pad = _round_up(H, _LANE)
    w1p = jnp.pad(w1, ((0, E_pad - E), (0, H_pad - H))).astype(compute_dtype)
    w2p = jnp.pad(w2, ((0, H_pad - H), (0, E_pad - E))).astype(compute_dtype)
    b1p = jnp.pad(jnp.reshape(b1, (1, -1)), ((0, 0), (0, H_pad - H))).astype(jnp.float32)
    b2p = jnp.pad(jnp.reshape(b2, (1, -1)), ((0, 0), (0, E_pad - E))).astype(jnp.float32)
    return {"w1": w1p, "b1": b1p, "w2": w2p, "b2": b2p, "E": E, "H": H}


@functools.partial(jax.jit, static_argnames=("E", "tm", "th", "fused", "vmem_limit"))
def _mlp_call(x2d, w1p, b1p, w2p, b2p, *, E, tm, th, fused, vmem_limit):
    T = x2d.shape[0]
    E_pad, H_pad = w1p.shape
    out_dtype = x2d.dtype
    itemsize = jnp.dtype(out_dtype).itemsize
    T_pad = _round_up(max(T, 1), tm)

    xp = x2d
    if T_pad != T or E_pad != E:
        xp = jnp.pad(x2d, ((0, T_pad - T), (0, E_pad - E)))

    if fused:
        grid = (T_pad // tm,)
        cost = pl.CostEstimate(
            flops=4 * T_pad * E_pad * H_pad,
            transcendentals=T_pad * H_pad,
            bytes_accessed=(T_pad * E_pad * 2 * itemsize      # x in + out
                            + 2 * E_pad * H_pad * 2           # weights once
                            + (H_pad + E_pad) * 4),           # biases
        )
        out = pl.pallas_call(
            _mlp_kernel_fused,
            out_shape=jax.ShapeDtypeStruct((T_pad, E_pad), out_dtype),
            grid_spec=pltpu.PrefetchScalarGridSpec(
                num_scalar_prefetch=0,
                grid=grid,
                in_specs=[
                    pl.BlockSpec((tm, E_pad), lambda i: (i, 0)),       # x tile
                    pl.BlockSpec((E_pad, H_pad), lambda i: (0, 0)),    # w1 (resident)
                    pl.BlockSpec((1, H_pad), lambda i: (0, 0)),        # b1
                    pl.BlockSpec((H_pad, E_pad), lambda i: (0, 0)),    # w2 (resident)
                    pl.BlockSpec((1, E_pad), lambda i: (0, 0)),        # b2
                ],
                out_specs=pl.BlockSpec((tm, E_pad), lambda i: (i, 0)),
            ),
            compiler_params=pltpu.CompilerParams(
                dimension_semantics=("parallel",),
                vmem_limit_bytes=vmem_limit,
            ),
            cost_estimate=cost,
        )(xp, w1p, b1p, w2p, b2p)
    else:
        grid = (T_pad // tm, H_pad // th)
        n_row_tiles = T_pad // tm
        cost = pl.CostEstimate(
            flops=4 * T_pad * E_pad * H_pad,
            transcendentals=T_pad * H_pad,
            bytes_accessed=(T_pad * E_pad * 2 * itemsize
                            + n_row_tiles * 2 * E_pad * H_pad * 2  # re-streamed weights
                            + (H_pad + E_pad) * 4),
        )
        in_specs = [
            pl.BlockSpec((tm, E_pad), lambda i, hk: (i, 0)),     # x tile
            pl.BlockSpec((E_pad, th), lambda i, hk: (0, hk)),    # w1 chunk
            pl.BlockSpec((1, th), lambda i, hk: (0, hk)),        # b1 chunk
            pl.BlockSpec((th, E_pad), lambda i, hk: (hk, 0)),    # w2 chunk
            pl.BlockSpec((1, E_pad), lambda i, hk: (0, 0)),      # b2
        ]
        out_spec = pl.BlockSpec((tm, E_pad), lambda i, hk: (i, 0))
        if out_dtype == jnp.float32:
            kernel = _mlp_kernel_stream_f32out
            scratch = ()
        else:
            kernel = _mlp_kernel_stream_acc
            scratch = (pltpu.VMEM((tm, E_pad), jnp.float32),)
        out = pl.pallas_call(
            kernel,
            out_shape=jax.ShapeDtypeStruct((T_pad, E_pad), out_dtype),
            grid_spec=pltpu.PrefetchScalarGridSpec(
                num_scalar_prefetch=0,
                grid=grid,
                in_specs=in_specs,
                out_specs=out_spec,
                scratch_shapes=scratch,
            ),
            compiler_params=pltpu.CompilerParams(
                dimension_semantics=("parallel", "arbitrary"),
                vmem_limit_bytes=vmem_limit,
            ),
            cost_estimate=cost,
        )(xp, w1p, b1p, w2p, b2p)

    return out[:T, :E]


def mlp_forward(x, params):
    """x: (..., E) -> (..., E); fused Linear -> GELU -> Linear in one kernel."""
    E = params["E"]
    orig_shape = x.shape
    x2d = x.reshape(-1, E)
    E_pad, H_pad = params["w1"].shape
    itemsize = jnp.dtype(x.dtype).itemsize
    fused, tm, th, vmem_limit = _choose_plan(x2d.shape[0], E_pad, H_pad,
                                             itemsize, itemsize)
    out = _mlp_call(x2d, params["w1"], params["b1"], params["w2"], params["b2"],
                    E=E, tm=tm, th=th, fused=fused, vmem_limit=vmem_limit)
    return out.reshape(orig_shape)


def init_mlp_params(key, embedding_dim, mlp_dim, dtype=jnp.float32):
    """Deterministic init mimicking nn.Linear's U(-1/sqrt(in), 1/sqrt(in))."""
    k1, k2, k3, k4 = jax.random.split(key, 4)
    bound1 = 1.0 / math.sqrt(embedding_dim)
    bound2 = 1.0 / math.sqrt(mlp_dim)
    w1 = jax.random.uniform(k1, (embedding_dim, mlp_dim), dtype, -bound1, bound1)
    b1 = jax.random.uniform(k2, (1, mlp_dim), dtype, -bound1, bound1)
    w2 = jax.random.uniform(k3, (mlp_dim, embedding_dim), dtype, -bound2, bound2)
    b2 = jax.random.uniform(k4, (1, embedding_dim), dtype, -bound2, bound2)
    return w1, b1, w2, b2


if __name__ == "__main__":
    # Small shapes consistent with the module: x is (batch, seq, embedding_dim).
    batch, seq, embedding_dim, mlp_dim = 2, 8, 32, 64

    key = jax.random.PRNGKey(0)
    kx, kp = jax.random.split(key)
    x = jax.random.normal(kx, (batch, seq, embedding_dim), jnp.float32)
    w1, b1, w2, b2 = init_mlp_params(kp, embedding_dim, mlp_dim)

    params = prepare_mlp_params(w1, b1, w2, b2)
    out = mlp_forward(x, params)
    out = jax.block_until_ready(out)

    # Pure-JAX f32 reference (Linear -> exact GELU -> Linear). The kernel uses
    # bf16 MXU operands with f32 accumulation, so tolerance is loosened.
    ref = x.reshape(-1, embedding_dim) @ w1 + b1
    ref = 0.5 * ref * (1.0 + jax.lax.erf(ref / jnp.float32(math.sqrt(2.0))))
    ref = (ref @ w2 + b2).reshape(batch, seq, embedding_dim)
    assert jnp.allclose(out, ref, atol=3e-2, rtol=3e-2), "mismatch vs reference"

    print("KERNEL_OK")
</pallas_src>

<mosaic_0001>
module attributes {stable_mosaic.version = 11 : i64} {
  func.func @_mlp_kernel_fused(%arg0: i32, %arg1: memref<128x128xf32, #tpu.memory_space<vmem>>, %arg2: memref<128x128xbf16, #tpu.memory_space<vmem>>, %arg3: memref<1x128xf32, #tpu.memory_space<vmem>>, %arg4: memref<128x128xbf16, #tpu.memory_space<vmem>>, %arg5: memref<1x128xf32, #tpu.memory_space<vmem>>, %arg6: memref<128x128xf32, #tpu.memory_space<vmem>>) attributes {dimension_semantics = [#tpu.dimension_semantics<parallel>], iteration_bounds = array<i64: 1>, scalar_prefetch = 0 : i64, scratch_operands = 0 : i64, tpu.core_type = #tpu.core_type<tc>, window_params = [{transform_indices = @transform_0, window_bounds = array<i64: 128, 128>}, {pipeline_mode = #tpu.pipeline_mode<synchronous>, transform_indices = @transform_1, window_bounds = array<i64: 128, 128>}, {pipeline_mode = #tpu.pipeline_mode<synchronous>, transform_indices = @transform_2, window_bounds = array<i64: 1, 128>}, {pipeline_mode = #tpu.pipeline_mode<synchronous>, transform_indices = @transform_3, window_bounds = array<i64: 128, 128>}, {pipeline_mode = #tpu.pipeline_mode<synchronous>, transform_indices = @transform_4, window_bounds = array<i64: 1, 128>}, {transform_indices = @transform_5, window_bounds = array<i64: 128, 128>}]} {
    %c0 = arith.constant 0 : index
    %c0_0 = arith.constant 0 : index
    %0 = vector.load %arg1[%c0, %c0_0] : memref<128x128xf32, #tpu.memory_space<vmem>>, vector<128x128xf32>
    %1 = arith.truncf %0 : vector<128x128xf32> to vector<128x128xbf16>
    %c0_1 = arith.constant 0 : index
    %c0_2 = arith.constant 0 : index
    %2 = vector.load %arg2[%c0_1, %c0_2] : memref<128x128xbf16, #tpu.memory_space<vmem>>, vector<128x128xbf16>
    %cst = arith.constant dense<0.000000e+00> : vector<128x128xf32>
    %3 = tpu.matmul %1, %2, %cst {dimension_numbers = #tpu.dot_dimension_numbers<[1], [0], [0], [1], [0, 0, 1, 1], [], []>} : vector<128x128xbf16>, vector<128x128xbf16>, vector<128x128xf32> -> vector<128x128xf32>
    %c0_3 = arith.constant 0 : index
    %c0_4 = arith.constant 0 : index
    %4 = vector.load %arg3[%c0_3, %c0_4] : memref<1x128xf32, #tpu.memory_space<vmem>>, vector<1x128xf32>
    %5 = vector.broadcast %4 : vector<1x128xf32> to vector<128x128xf32>
    %6 = arith.addf %3, %5 : vector<128x128xf32>
    %cst_5 = arith.constant 5.000000e-01 : f32
    %7 = vector.broadcast %cst_5 : f32 to vector<128x128xf32>
    %8 = arith.mulf %7, %6 : vector<128x128xf32>
    %cst_6 = arith.constant 0.707106769 : f32
    %9 = vector.broadcast %cst_6 : f32 to vector<128x128xf32>
    %10 = arith.mulf %6, %9 : vector<128x128xf32>
    %11 = math.erf %10 : vector<128x128xf32>
    %cst_7 = arith.constant 1.000000e+00 : f32
    %12 = vector.broadcast %cst_7 : f32 to vector<128x128xf32>
    %13 = arith.addf %12, %11 : vector<128x128xf32>
    %14 = arith.mulf %8, %13 : vector<128x128xf32>
    %15 = arith.truncf %14 : vector<128x128xf32> to vector<128x128xbf16>
    %c0_8 = arith.constant 0 : index
    %c0_9 = arith.constant 0 : index
    %16 = vector.load %arg4[%c0_8, %c0_9] : memref<128x128xbf16, #tpu.memory_space<vmem>>, vector<128x128xbf16>
    %cst_10 = arith.constant dense<0.000000e+00> : vector<128x128xf32>
    %17 = tpu.matmul %15, %16, %cst_10 {dimension_numbers = #tpu.dot_dimension_numbers<[1], [0], [0], [1], [0, 0, 1, 1], [], []>} : vector<128x128xbf16>, vector<128x128xbf16>, vector<128x128xf32> -> vector<128x128xf32>
    %c0_11 = arith.constant 0 : index
    %c0_12 = arith.constant 0 : index
    %18 = vector.load %arg5[%c0_11, %c0_12] : memref<1x128xf32, #tpu.memory_space<vmem>>, vector<1x128xf32>
    %19 = vector.broadcast %18 : vector<1x128xf32> to vector<128x128xf32>
    %20 = arith.addf %17, %19 : vector<128x128xf32>
    %c0_13 = arith.constant 0 : index
    %c0_14 = arith.constant 0 : index
    %21 = vector.load %arg6[%c0_13, %c0_14] : memref<128x128xf32, #tpu.memory_space<vmem>>, vector<128x128xf32>
    tpu.vector_store %arg6[%c0_13, %c0_14], %20 {strides = array<i32>} : memref<128x128xf32, #tpu.memory_space<vmem>>, vector<128x128xf32>,
    return
  }
  func.func @transform_0(%arg0: i32) -> (i32, i32) {
    %c0_i32 = arith.constant 0 : i32
    %c0_i32_0 = arith.constant 0 : i32
    return %arg0, %c0_i32 : i32, i32
  }
  func.func @transform_1(%arg0: i32) -> (i32, i32) {
    %c0_i32 = arith.constant 0 : i32
    %c0_i32_0 = arith.constant 0 : i32
    %c0_i32_1 = arith.constant 0 : i32
    return %c0_i32, %c0_i32_0 : i32, i32
  }
  func.func @transform_2(%arg0: i32) -> (i32, i32) {
    %c0_i32 = arith.constant 0 : i32
    %c0_i32_0 = arith.constant 0 : i32
    %c0_i32_1 = arith.constant 0 : i32
    return %c0_i32, %c0_i32_0 : i32, i32
  }
  func.func @transform_3(%arg0: i32) -> (i32, i32) {
    %c0_i32 = arith.constant 0 : i32
    %c0_i32_0 = arith.constant 0 : i32
    %c0_i32_1 = arith.constant 0 : i32
    return %c0_i32, %c0_i32_0 : i32, i32
  }
  func.func @transform_4(%arg0: i32) -> (i32, i32) {
    %c0_i32 = arith.constant 0 : i32
    %c0_i32_0 = arith.constant 0 : i32
    %c0_i32_1 = arith.constant 0 : i32
    return %c0_i32, %c0_i32_0 : i32, i32
  }
  func.func @transform_5(%arg0: i32) -> (i32, i32) {
    %c0_i32 = arith.constant 0 : i32
    %c0_i32_0 = arith.constant 0 : i32
    return %arg0, %c0_i32 : i32, i32
  }
}

</mosaic_0001>

<llo_original>
// kernel: _mlp_call.1
$region0: #{_mlp_call.1}
  #allocation0 [shape = 'u32[]', space=smem, size = 0x4, offset = 0x4, fixed_abs, tag = 'smem constant byte address 0x4 - core index']
  #allocation1 [shape = 'u32[144,128]{1,0:T(1,128)}', space=vmem, size = 0x12000, scoped, tag = 'internal scratch']
  %s0 = inlined_call_operand.vmem [shape: f32[128,128], index: 0, kind: input, shape index: {}]
  %s1 = inlined_call_operand.vmem [shape: bf16[128,128], index: 1, kind: input, shape index: {}]
  %s2 = inlined_call_operand.vmem [shape: f32[1,128], index: 2, kind: input, shape index: {}]
  %s3 = inlined_call_operand.vmem [shape: bf16[128,128], index: 3, kind: input, shape index: {}]
  %s4 = inlined_call_operand.vmem [shape: f32[1,128], index: 4, kind: input, shape index: {}]
  %s5 = inlined_call_operand.vmem [shape: f32[128,128], index: 5, kind: output, shape index: {}]
  %s6 = sld [smem:[#allocation0]]
  $region30: #{_mlp_call.1} parent=0
    _
  %s8 = ssub.s32 1, %s6
  %s9 = scalar_select 0, %s8, %s6
  // Predicated region
  $region2: #{_mlp_call.1} parent=0 // pred_check
    _
  $region3: #{_mlp_call.1} parent=0 // pred_check_branch
    %11 = sbr.rel (0) target = $region5
  $region4: #{_mlp_call.1} parent=0 // pred_region
    _
  $region5: #{_mlp_call.1} parent=0 // pred_fallthru
    _
  // Predicated region
  $region6: #{_mlp_call.1} parent=0 // pred_check
    _
  $region7: #{_mlp_call.1} parent=0 // pred_check_branch
    %13 = sbr.rel (0) target = $region9
  $region8: #{_mlp_call.1} parent=0 // pred_region
    _
  $region9: #{_mlp_call.1} parent=0 // pred_fallthru
    _
  // Predicated region
  $region10: #{_mlp_call.1} parent=0 // pred_check
    _
  $region11: #{_mlp_call.1} parent=0 // pred_check_branch
    %15 = sbr.rel (0) target = $region13
  $region12: #{_mlp_call.1} parent=0 // pred_region
    _
  $region13: #{_mlp_call.1} parent=0 // pred_fallthru
    _
  // Predicated region
  $region14: #{_mlp_call.1} parent=0 // pred_check
    _
  $region15: #{_mlp_call.1} parent=0 // pred_check_branch
    %17 = sbr.rel (0) target = $region17
  $region16: #{_mlp_call.1} parent=0 // pred_region
    _
  $region17: #{_mlp_call.1} parent=0 // pred_fallthru
    _
  // Predicated region
  $region18: #{_mlp_call.1} parent=0 // pred_check
    _
  $region19: #{_mlp_call.1} parent=0 // pred_check_branch
    %19 = sbr.rel (0) target = $region21
  $region20: #{_mlp_call.1} parent=0 // pred_region
    _
  $region21: #{_mlp_call.1} parent=0 // pred_fallthru
    _
  %v21 = vld [vmem:[%s0] sm:$0xff]
  %v22 = vld [vmem:[%s0 + $0x8] sm:$0xff]
  %v23 = vld [vmem:[%s0 + $0x10] sm:$0xff]
  %v24 = vld [vmem:[%s0 + $0x18] sm:$0xff]
  %v25 = vld [vmem:[%s0 + $0x20] sm:$0xff]
  %v26 = vld [vmem:[%s0 + $0x28] sm:$0xff]
  %v27 = vld [vmem:[%s0 + $0x30] sm:$0xff]
  %v28 = vld [vmem:[%s0 + $0x38] sm:$0xff]
  %v29 = vld [vmem:[%s0 + $0x40] sm:$0xff]
  %v30 = vld [vmem:[%s0 + $0x48] sm:$0xff]
  %v31 = vld [vmem:[%s0 + $0x50] sm:$0xff]
  %v32 = vld [vmem:[%s0 + $0x58] sm:$0xff]
  %v33 = vld [vmem:[%s0 + $0x60] sm:$0xff]
  %v34 = vld [vmem:[%s0 + $0x68] sm:$0xff]
  %v35 = vld [vmem:[%s0 + $0x70] sm:$0xff]
  %v36 = vld [vmem:[%s0 + $0x78] sm:$0xff]
  %v37 = vpack.c.bf16 %v22, %v21
  %v38 = vpack.c.bf16 %v24, %v23
  %v39 = vpack.c.bf16 %v26, %v25
  %v40 = vpack.c.bf16 %v28, %v27
  %v41 = vpack.c.bf16 %v30, %v29
  %v42 = vpack.c.bf16 %v32, %v31
  %v43 = vpack.c.bf16 %v34, %v33
  %v44 = vpack.c.bf16 %v36, %v35
  %v45 = vld [vmem:[%s1] sm:$0xf]
  %v46 = vld [vmem:[%s1 + $0x4] sm:$0xf]
  %v47 = vld [vmem:[%s1 + $0x8] sm:$0xf]
  %v48 = vld [vmem:[%s1 + $0xc] sm:$0xf]
  %v49 = vld [vmem:[%s1 + $0x10] sm:$0xf]
  %v50 = vld [vmem:[%s1 + $0x14] sm:$0xf]
  %v51 = vld [vmem:[%s1 + $0x18] sm:$0xf]
  %v52 = vld [vmem:[%s1 + $0x1c] sm:$0xf]
  %v53 = vld [vmem:[%s1 + $0x20] sm:$0xf]
  %v54 = vld [vmem:[%s1 + $0x24] sm:$0xf]
  %v55 = vld [vmem:[%s1 + $0x28] sm:$0xf]
  %v56 = vld [vmem:[%s1 + $0x2c] sm:$0xf]
  %v57 = vld [vmem:[%s1 + $0x30] sm:$0xf]
  %v58 = vld [vmem:[%s1 + $0x34] sm:$0xf]
  %v59 = vld [vmem:[%s1 + $0x38] sm:$0xf]
  %v60 = vld [vmem:[%s1 + $0x3c] sm:$0xf]
  %v61 = vld [vmem:[%s2] sm:$0x1]
  %v63 = vlaneseq
  %v64 = vshrl.u32 %v63, 7
  %v65 = vsub.s32 0, %v64
  %v66 = vrot.slane %v61, %v65
  %v84 = vunpack.c.l.b16 %v45
  %v85 = vunpack.c.l.b16 %v46
  %v86 = vunpack.c.l.b16 %v47
  %v87 = vunpack.c.l.b16 %v48
  %v88 = vunpack.c.l.b16 %v49
  %v89 = vunpack.c.l.b16 %v50
  %v90 = vunpack.c.l.b16 %v51
  %v91 = vunpack.c.l.b16 %v52
  %v92 = vunpack.c.l.b16 %v53
  %v93 = vunpack.c.l.b16 %v54
  %v94 = vunpack.c.l.b16 %v55
  %v95 = vunpack.c.l.b16 %v56
  %v96 = vunpack.c.l.b16 %v57
  %v97 = vunpack.c.l.b16 %v58
  %v98 = vunpack.c.l.b16 %v59
  %v99 = vunpack.c.l.b16 %v60
  %v100 = vpack.c.b16 %v85, %v84
  %v101 = vpack.c.b16 %v87, %v86
  %v102 = vpack.c.b16 %v89, %v88
  %v103 = vpack.c.b16 %v91, %v90
  %v104 = vpack.c.b16 %v93, %v92
  %v105 = vpack.c.b16 %v95, %v94
  %v106 = vpack.c.b16 %v97, %v96
  %v107 = vpack.c.b16 %v99, %v98
  %116 = vmatprep.subr.bf16.mxu0 0
  %117 = vmatpush1.bf16.msra.mxu0 %v107
  %118 = vmatprep.subr.bf16.mxu0 0
  %119 = vmatpush1.bf16.msra.mxu0 %v106
  %120 = vmatprep.subr.bf16.mxu0 0
  %121 = vmatpush1.bf16.msra.mxu0 %v105
  %122 = vmatprep.subr.bf16.mxu0 0
  %123 = vmatpush1.bf16.msra.mxu0 %v104
  %124 = vmatprep.subr.bf16.mxu0 0
  %125 = vmatpush1.bf16.msra.mxu0 %v103
  %126 = vmatprep.subr.bf16.mxu0 0
  %127 = vmatpush1.bf16.msra.mxu0 %v102
  %128 = vmatprep.subr.bf16.mxu0 0
  %129 = vmatpush1.bf16.msra.mxu0 %v101
  %130 = vmatprep.subr.bf16.mxu0 0
  %131 = vmatpush1.bf16.msra.mxu0 %v100
  %132 = vmatprep.subr.bf16.mxu0 0
  %133 = vmatpush2.bf16.msra.mxu0 0
  %134 = vmatprep.subr.bf16.mxu0 0
  %135 = vmatpush2.bf16.msra.mxu0 0
  %136 = vmatprep.subr.bf16.mxu0 0
  %137 = vmatpush2.bf16.msra.mxu0 0
  %138 = vmatprep.subr.bf16.mxu0 0
  %139 = vmatpush2.bf16.msra.mxu0 0
  %140 = vmatprep.subr.bf16.mxu0 0
  %141 = vmatpush2.bf16.msra.mxu0 0
  %142 = vmatprep.subr.bf16.mxu0 0
  %143 = vmatpush2.bf16.msra.mxu0 0
  %144 = vmatprep.subr.bf16.mxu0 0
  %145 = vmatpush2.bf16.msra.mxu0 0
  %146 = vmatprep.subr.bf16.mxu0 0
  %147 = vmatpush2.bf16.msra.mxu0 0
  %148 = vmatprep.mubr.bf16.mxu0 0
  %149 = vmatmul.mubr.bf16.gmra.mxu0 %v37
  %v150 = vpop.f32.mrf.mxu0
  %v151 = vadd.f32 %v66, %v150
  %v152 = vpop.f32.mrf.mxu0
  %v153 = vpop.f32.mrf.mxu0
  %v154 = vadd.f32 %v66, %v153
  %v155 = vpop.f32.mrf.mxu0
  %156 = vmatprep.mubr.bf16.mxu0 0
  %157 = vmatmul.mubr.bf16.gmra.mxu0 %v38
  %v158 = vpop.f32.mrf.mxu0
  %v159 = vadd.f32 %v66, %v158
  %v160 = vpop.f32.mrf.mxu0
  %v161 = vpop.f32.mrf.mxu0
  %v162 = vadd.f32 %v66, %v161
  %v163 = vpop.f32.mrf.mxu0
  %164 = vmatprep.mubr.bf16.mxu0 0
  %165 = vmatmul.mubr.bf16.gmra.mxu0 %v39
  %v166 = vpop.f32.mrf.mxu0
  %v167 = vadd.f32 %v66, %v166
  %v168 = vpop.f32.mrf.mxu0
  %v169 = vpop.f32.mrf.mxu0
  %v170 = vadd.f32 %v66, %v169
  %v171 = vpop.f32.mrf.mxu0
  %172 = vmatprep.mubr.bf16.mxu0 0
  %173 = vmatmul.mubr.bf16.gmra.mxu0 %v40
  %v174 = vpop.f32.mrf.mxu0
  %v175 = vadd.f32 %v66, %v174
  %v176 = vpop.f32.mrf.mxu0
  %v177 = vpop.f32.mrf.mxu0
  %v178 = vadd.f32 %v66, %v177
  %v179 = vpop.f32.mrf.mxu0
  %180 = vmatprep.mubr.bf16.mxu0 0
  %181 = vmatmul.mubr.bf16.gmra.mxu0 %v41
  %v182 = vpop.f32.mrf.mxu0
  %v183 = vadd.f32 %v66, %v182
  %v184 = vpop.f32.mrf.mxu0
  %v185 = vpop.f32.mrf.mxu0
  %v186 = vadd.f32 %v66, %v185
  %v187 = vpop.f32.mrf.mxu0
  %188 = vmatprep.mubr.bf16.mxu0 0
  %189 = vmatmul.mubr.bf16.gmra.mxu0 %v42
  %v190 = vpop.f32.mrf.mxu0
  %v191 = vadd.f32 %v66, %v190
  %v192 = vpop.f32.mrf.mxu0
  %v193 = vpop.f32.mrf.mxu0
  %v194 = vadd.f32 %v66, %v193
  %v195 = vpop.f32.mrf.mxu0
  %196 = vmatprep.mubr.bf16.mxu0 0
  %197 = vmatmul.mubr.bf16.gmra.mxu0 %v43
  %v198 = vpop.f32.mrf.mxu0
  %v199 = vadd.f32 %v66, %v198
  %v200 = vpop.f32.mrf.mxu0
  %v201 = vpop.f32.mrf.mxu0
  %v202 = vadd.f32 %v66, %v201
  %v203 = vpop.f32.mrf.mxu0
  %204 = vmatprep.mubr.bf16.mxu0 0
  %205 = vmatmul.mubr.bf16.gmra.mxu0 %v44
  %v206 = vpop.f32.mrf.mxu0
  %v207 = vadd.f32 %v66, %v206
  %v208 = vpop.f32.mrf.mxu0
  %v209 = vpop.f32.mrf.mxu0
  %v210 = vadd.f32 %v66, %v209
  %v211 = vpop.f32.mrf.mxu0
  %212 = vdwg.mxu0
  %v213 = vmul.f32 %v151, 0.5
  %v214 = vmul.f32 %v154, 0.5
  %v215 = vmul.f32 %v159, 0.5
  %v216 = vmul.f32 %v162, 0.5
  %v217 = vmul.f32 %v167, 0.5
  %v218 = vmul.f32 %v170, 0.5
  %v219 = vmul.f32 %v175, 0.5
  %v220 = vmul.f32 %v178, 0.5
  %v221 = vmul.f32 %v183, 0.5
  %v222 = vmul.f32 %v186, 0.5
  %v223 = vmul.f32 %v191, 0.5
  %v224 = vmul.f32 %v194, 0.5
  %v225 = vmul.f32 %v199, 0.5
  %v226 = vmul.f32 %v202, 0.5
  %v227 = vmul.f32 %v207, 0.5
  %v228 = vmul.f32 %v210, 0.5
  %v229 = vmul.f32 %v151, 0.70710677
  %v230 = vmul.f32 %v154, 0.70710677
  %v231 = vmul.f32 %v159, 0.70710677
  %v232 = vmul.f32 %v162, 0.70710677
  %v233 = vmul.f32 %v167, 0.70710677
  %v234 = vmul.f32 %v170, 0.70710677
  %v235 = vmul.f32 %v175, 0.70710677
  %v236 = vmul.f32 %v178, 0.70710677
  %v237 = vmul.f32 %v183, 0.70710677
  %v238 = vmul.f32 %v186, 0.70710677
  %v239 = vmul.f32 %v191, 0.70710677
  %v240 = vmul.f32 %v194, 0.70710677
  %v241 = vmul.f32 %v199, 0.70710677
  %v242 = vmul.f32 %v202, 0.70710677
  %v243 = vmul.f32 %v207, 0.70710677
  %v244 = vmul.f32 %v210, 0.70710677
  %v245 = verf.f32.pop %v229
  %v246 = verf.f32.pop %v230
  %v247 = verf.f32.pop %v231
  %v248 = verf.f32.pop %v232
  %v249 = verf.f32.pop %v233
  %v250 = verf.f32.pop %v234
  %v251 = verf.f32.pop %v235
  %v252 = verf.f32.pop %v236
  %v253 = verf.f32.pop %v237
  %v254 = verf.f32.pop %v238
  %v255 = verf.f32.pop %v239
  %v256 = verf.f32.pop %v240
  %v257 = verf.f32.pop %v241
  %v258 = verf.f32.pop %v242
  %v259 = verf.f32.pop %v243
  %v260 = verf.f32.pop %v244
  %v261 = vadd.f32 %v245, 1.0
  %v262 = vadd.f32 %v246, 1.0
  %v263 = vadd.f32 %v247, 1.0
  %v264 = vadd.f32 %v248, 1.0
  %v265 = vadd.f32 %v249, 1.0
  %v266 = vadd.f32 %v250, 1.0
  %v267 = vadd.f32 %v251, 1.0
  %v268 = vadd.f32 %v252, 1.0
  %v269 = vadd.f32 %v253, 1.0
  %v270 = vadd.f32 %v254, 1.0
  %v271 = vadd.f32 %v255, 1.0
  %v272 = vadd.f32 %v256, 1.0
  %v273 = vadd.f32 %v257, 1.0
  %v274 = vadd.f32 %v258, 1.0
  %v275 = vadd.f32 %v259, 1.0
  %v276 = vadd.f32 %v260, 1.0
  %v277 = vmul.f32 %v213, %v261
  %v278 = vmul.f32 %v214, %v262
  %v279 = vmul.f32 %v215, %v263
  %v280 = vmul.f32 %v216, %v264
  %v281 = vmul.f32 %v217, %v265
  %v282 = vmul.f32 %v218, %v266
  %v283 = vmul.f32 %v219, %v267
  %v284 = vmul.f32 %v220, %v268
  %v285 = vmul.f32 %v221, %v269
  %v286 = vmul.f32 %v222, %v270
  %v287 = vmul.f32 %v223, %v271
  %v288 = vmul.f32 %v224, %v272
  %v289 = vmul.f32 %v225, %v273
  %v290 = vmul.f32 %v226, %v274
  %v291 = vmul.f32 %v227, %v275
  %v292 = vmul.f32 %v228, %v276
  %v293 = vpack.c.bf16 %v278, %v277
  %v294 = vpack.c.bf16 %v280, %v279
  %v295 = vpack.c.bf16 %v282, %v281
  %v296 = vpack.c.bf16 %v284, %v283
  %v297 = vpack.c.bf16 %v286, %v285
  %v298 = vpack.c.bf16 %v288, %v287
  %v299 = vpack.c.bf16 %v290, %v289
  %v300 = vpack.c.bf16 %v292, %v291
  %v301 = vld [vmem:[%s3] sm:$0xf]
  %v302 = vld [vmem:[%s3 + $0x4] sm:$0xf]
  %v303 = vld [vmem:[%s3 + $0x8] sm:$0xf]
  %v304 = vld [vmem:[%s3 + $0xc] sm:$0xf]
  %v305 = vld [vmem:[%s3 + $0x10] sm:$0xf]
  %v306 = vld [vmem:[%s3 + $0x14] sm:$0xf]
  %v307 = vld [vmem:[%s3 + $0x18] sm:$0xf]
  %v308 = vld [vmem:[%s3 + $0x1c] sm:$0xf]
  %v309 = vld [vmem:[%s3 + $0x20] sm:$0xf]
  %v310 = vld [vmem:[%s3 + $0x24] sm:$0xf]
  %v311 = vld [vmem:[%s3 + $0x28] sm:$0xf]
  %v312 = vld [vmem:[%s3 + $0x2c] sm:$0xf]
  %v313 = vld [vmem:[%s3 + $0x30] sm:$0xf]
  %v314 = vld [vmem:[%s3 + $0x34] sm:$0xf]
  %v315 = vld [vmem:[%s3 + $0x38] sm:$0xf]
  %v316 = vld [vmem:[%s3 + $0x3c] sm:$0xf]
  %v317 = vld [vmem:[%s4] sm:$0x1]
  %v319 = vlaneseq
  %v320 = vshrl.u32 %v319, 7
  %v321 = vsub.s32 0, %v320
  %v322 = vrot.slane %v317, %v321
  %v340 = vunpack.c.l.b16 %v301
  %v341 = vunpack.c.l.b16 %v302
  %v342 = vunpack.c.l.b16 %v303
  %v343 = vunpack.c.l.b16 %v304
  %v344 = vunpack.c.l.b16 %v305
  %v345 = vunpack.c.l.b16 %v306
  %v346 = vunpack.c.l.b16 %v307
  %v347 = vunpack.c.l.b16 %v308
  %v348 = vunpack.c.l.b16 %v309
  %v349 = vunpack.c.l.b16 %v310
  %v350 = vunpack.c.l.b16 %v311
  %v351 = vunpack.c.l.b16 %v312
  %v352 = vunpack.c.l.b16 %v313
  %v353 = vunpack.c.l.b16 %v314
  %v354 = vunpack.c.l.b16 %v315
  %v355 = vunpack.c.l.b16 %v316
  %v356 = vpack.c.b16 %v341, %v340
  %v357 = vpack.c.b16 %v343, %v342
  %v358 = vpack.c.b16 %v345, %v344
  %v359 = vpack.c.b16 %v347, %v346
  %v360 = vpack.c.b16 %v349, %v348
  %v361 = vpack.c.b16 %v351, %v350
  %v362 = vpack.c.b16 %v353, %v352
  %v363 = vpack.c.b16 %v355, %v354
  %372 = vmatprep.subr.bf16.mxu0 0
  %373 = vmatpush1.bf16.msra.mxu0 %v363
  %374 = vmatprep.subr.bf16.mxu0 0
  %375 = vmatpush1.bf16.msra.mxu0 %v362
  %376 = vmatprep.subr.bf16.mxu0 0
  %377 = vmatpush1.bf16.msra.mxu0 %v361
  %378 = vmatprep.subr.bf16.mxu0 0
  %379 = vmatpush1.bf16.msra.mxu0 %v360
  %380 = vmatprep.subr.bf16.mxu0 0
  %381 = vmatpush1.bf16.msra.mxu0 %v359
  %382 = vmatprep.subr.bf16.mxu0 0
  %383 = vmatpush1.bf16.msra.mxu0 %v358
  %384 = vmatprep.subr.bf16.mxu0 0
  %385 = vmatpush1.bf16.msra.mxu0 %v357
  %386 = vmatprep.subr.bf16.mxu0 0
  %387 = vmatpush1.bf16.msra.mxu0 %v356
  %388 = vmatprep.subr.bf16.mxu0 0
  %389 = vmatpush2.bf16.msra.mxu0 0
  %390 = vmatprep.subr.bf16.mxu0 0
  %391 = vmatpush2.bf16.msra.mxu0 0
  %392 = vmatprep.subr.bf16.mxu0 0
  %393 = vmatpush2.bf16.msra.mxu0 0
  %394 = vmatprep.subr.bf16.mxu0 0
  %395 = vmatpush2.bf16.msra.mxu0 0
  %396 = vmatprep.subr.bf16.mxu0 0
  %397 = vmatpush2.bf16.msra.mxu0 0
  %398 = vmatprep.subr.bf16.mxu0 0
  %399 = vmatpush2.bf16.msra.mxu0 0
  %400 = vmatprep.subr.bf16.mxu0 0
  %401 = vmatpush2.bf16.msra.mxu0 0
  %402 = vmatprep.subr.bf16.mxu0 0
  %403 = vmatpush2.bf16.msra.mxu0 0
  %404 = vmatprep.mubr.bf16.mxu0 0
  %405 = vmatmul.mubr.bf16.gmra.mxu0 %v293
  %v406 = vpop.f32.mrf.mxu0
  %v407 = vadd.f32 %v322, %v406
  %v408 = vpop.f32.mrf.mxu0
  %v409 = vpop.f32.mrf.mxu0
  %v410 = vadd.f32 %v322, %v409
  %v411 = vpop.f32.mrf.mxu0
  %412 = vmatprep.mubr.bf16.mxu0 0
  %413 = vmatmul.mubr.bf16.gmra.mxu0 %v294
  %v414 = vpop.f32.mrf.mxu0
  %v415 = vadd.f32 %v322, %v414
  %v416 = vpop.f32.mrf.mxu0
  %v417 = vpop.f32.mrf.mxu0
  %v418 = vadd.f32 %v322, %v417
  %v419 = vpop.f32.mrf.mxu0
  %420 = vmatprep.mubr.bf16.mxu0 0
  %421 = vmatmul.mubr.bf16.gmra.mxu0 %v295
  %v422 = vpop.f32.mrf.mxu0
  %v423 = vadd.f32 %v322, %v422
  %v424 = vpop.f32.mrf.mxu0
  %v425 = vpop.f32.mrf.mxu0
  %v426 = vadd.f32 %v322, %v425
  %v427 = vpop.f32.mrf.mxu0
  %428 = vmatprep.mubr.bf16.mxu0 0
  %429 = vmatmul.mubr.bf16.gmra.mxu0 %v296
  %v430 = vpop.f32.mrf.mxu0
  %v431 = vadd.f32 %v322, %v430
  %v432 = vpop.f32.mrf.mxu0
  %v433 = vpop.f32.mrf.mxu0
  %v434 = vadd.f32 %v322, %v433
  %v435 = vpop.f32.mrf.mxu0
  %436 = vmatprep.mubr.bf16.mxu0 0
  %437 = vmatmul.mubr.bf16.gmra.mxu0 %v297
  %v438 = vpop.f32.mrf.mxu0
  %v439 = vadd.f32 %v322, %v438
  %v440 = vpop.f32.mrf.mxu0
  %v441 = vpop.f32.mrf.mxu0
  %v442 = vadd.f32 %v322, %v441
  %v443 = vpop.f32.mrf.mxu0
  %444 = vmatprep.mubr.bf16.mxu0 0
  %445 = vmatmul.mubr.bf16.gmra.mxu0 %v298
  %v446 = vpop.f32.mrf.mxu0
  %v447 = vadd.f32 %v322, %v446
  %v448 = vpop.f32.mrf.mxu0
  %v449 = vpop.f32.mrf.mxu0
  %v450 = vadd.f32 %v322, %v449
  %v451 = vpop.f32.mrf.mxu0
  %452 = vmatprep.mubr.bf16.mxu0 0
  %453 = vmatmul.mubr.bf16.gmra.mxu0 %v299
  %v454 = vpop.f32.mrf.mxu0
  %v455 = vadd.f32 %v322, %v454
  %v456 = vpop.f32.mrf.mxu0
  %v457 = vpop.f32.mrf.mxu0
  %v458 = vadd.f32 %v322, %v457
  %v459 = vpop.f32.mrf.mxu0
  %460 = vmatprep.mubr.bf16.mxu0 0
  %461 = vmatmul.mubr.bf16.gmra.mxu0 %v300
  %v462 = vpop.f32.mrf.mxu0
  %v463 = vadd.f32 %v322, %v462
  %v464 = vpop.f32.mrf.mxu0
  %v465 = vpop.f32.mrf.mxu0
  %v466 = vadd.f32 %v322, %v465
  %v467 = vpop.f32.mrf.mxu0
  %468 = vdwg.mxu0
  %469 = vst [vmem:[%s5] sm:$0xff] %v407
  %470 = vst [vmem:[%s5 + $0x8] sm:$0xff] %v410
  %471 = vst [vmem:[%s5 + $0x10] sm:$0xff] %v415
  %472 = vst [vmem:[%s5 + $0x18] sm:$0xff] %v418
  %473 = vst [vmem:[%s5 + $0x20] sm:$0xff] %v423
  %474 = vst [vmem:[%s5 + $0x28] sm:$0xff] %v426
  %475 = vst [vmem:[%s5 + $0x30] sm:$0xff] %v431
  %476 = vst [vmem:[%s5 + $0x38] sm:$0xff] %v434
  %477 = vst [vmem:[%s5 + $0x40] sm:$0xff] %v439
  %478 = vst [vmem:[%s5 + $0x48] sm:$0xff] %v442
  %479 = vst [vmem:[%s5 + $0x50] sm:$0xff] %v447
  %480 = vst [vmem:[%s5 + $0x58] sm:$0xff] %v450
  %481 = vst [vmem:[%s5 + $0x60] sm:$0xff] %v455
  %482 = vst [vmem:[%s5 + $0x68] sm:$0xff] %v458
  %483 = vst [vmem:[%s5 + $0x70] sm:$0xff] %v463
  %484 = vst [vmem:[%s5 + $0x78] sm:$0xff] %v466
  // Predicated region
  $region22: #{_mlp_call.1} parent=0 // pred_check
    _
  $region23: #{_mlp_call.1} parent=0 // pred_check_branch
    %486 = sbr.rel (0) target = $region25
  $region24: #{_mlp_call.1} parent=0 // pred_region
    _
  $region25: #{_mlp_call.1} parent=0 // pred_fallthru
    _
  // Predicated region
  $region26: #{_mlp_call.1} parent=0 // pred_check
    _
  $region27: #{_mlp_call.1} parent=0 // pred_check_branch
    %488 = sbr.rel (0) target = $region29
  $region28: #{_mlp_call.1} parent=0 // pred_region
    _
  $region29: #{_mlp_call.1} parent=0 // pred_fallthru
    _

</llo_original>
